<compile_context>
chip_gen: v6e
topology: v6e:2x2x1
jax: 0.10.0
libtpu: 0.0.40
codegen_flags: <defaults>
</compile_context>

<pallas_src>
from functools import partial

import jax
import jax.numpy as jnp
from jax import lax
from jax.experimental import pallas as pl
from jax.experimental.pallas import tpu as pltpu

NEG_SLOPE = 0.01  # PyTorch nn.LeakyReLU default


def _leaky_relu(t):
    return jnp.where(t > 0, t, NEG_SLOPE * t)


def _mp_kernel(*refs, H, Hh, C1, k, fuse_pv):
    """Fused message-passing forward.

    Operand order (conditional blocks only present when their flag says so):
      x (N,H), idx (Ne,2) int32, dst_row (1,Ne) int32, edge_attr (Ne,E),
      w_x (H, 2*C1+H), w_e (E,C1), b1 (1,C1),
      [k>0]     ew2_k (H,k), eb2_k (1,k),
      [fuse_pv] w2_pv (2Hh,2Hh), b2_pv (1,2Hh)
      [else]    pw2 (Hh,Hh), pb2 (1,Hh), vw2 (Hh,Hh), vb2 (1,Hh),
      nw1_a (H,H), nb1 (1,H), nw2 (H,H), nb2 (1,H), out (N,H)
    """
    it = iter(refs)
    x_ref = next(it)
    idx_ref = next(it)
    dstrow_ref = next(it)
    ea_ref = next(it)
    wx_ref = next(it)
    we_ref = next(it)
    b1_ref = next(it)
    if k > 0:
        ew2_ref = next(it)
        eb2_ref = next(it)
    if fuse_pv:
        w2pv_ref = next(it)
        b2pv_ref = next(it)
    else:
        pw2_ref = next(it)
        pb2_ref = next(it)
        vw2_ref = next(it)
        vb2_ref = next(it)
    nw1a_ref = next(it)
    nb1_ref = next(it)
    nw2_ref = next(it)
    nb2_ref = next(it)
    out_ref = next(it)

    x = x_ref[...]                                   # (N, H)  f32
    edge_attr = ea_ref[...]                          # (Ne, E) f32
    idx = idx_ref[...]                               # (Ne, 2) int32
    n_nodes = x.shape[0]
    n_edges = edge_attr.shape[0]

    # Gather one-hots (edge-major).  Built on-chip; 0/1 values are exact.
    node_ids_e = lax.broadcasted_iota(jnp.int32, (n_edges, n_nodes), 1)
    src_oh = (node_ids_e == idx[:, 0:1]).astype(jnp.float32)        # (Ne, N)
    dst_oh = (node_ids_e == idx[:, 1:2]).astype(jnp.float32)        # (Ne, N)
    # Scatter one-hot, built already transposed (node-major): keeps the
    # scatter a plain MXU dot with no sublane-axis contraction / relayout.
    node_ids_n = lax.broadcasted_iota(jnp.int32, (n_nodes, n_edges), 0)
    dst_oh_t = (node_ids_n == dstrow_ref[...]).astype(jnp.float32)  # (N, Ne)

    # Single wide node-granularity projection, then static lane slices.
    proj = jnp.dot(x, wx_ref[...], preferred_element_type=jnp.float32)  # (N, 2C1+H)
    xs = proj[:, :C1]             # x @ W1_src
    xd = proj[:, C1:2 * C1]       # x @ W1_dst
    xn = proj[:, 2 * C1:]         # x @ node_W1_x  (node_mlp layer-1, x part)

    # First edge layer: gather projections (project-then-gather) + edge term.
    h1 = _leaky_relu(
        jnp.dot(src_oh, xs, preferred_element_type=jnp.float32)
        + jnp.dot(dst_oh, xd, preferred_element_type=jnp.float32)
        + jnp.dot(edge_attr, we_ref[...], preferred_element_type=jnp.float32)
        + b1_ref[...])                                              # (Ne, C1)

    # Second layers -> combined messages (Ne, H).
    if k > 0:
        h1_pv = h1[:, H:]
        msg_k = _leaky_relu(
            jnp.dot(h1[:, :H], ew2_ref[...],
                    preferred_element_type=jnp.float32) + eb2_ref[...])  # (Ne, k)
    else:
        h1_pv = h1                                                   # (Ne, 2Hh)

    if fuse_pv:
        pv = jnp.dot(h1_pv, w2pv_ref[...],
                     preferred_element_type=jnp.float32) + b2pv_ref[...]  # (Ne, 2Hh)
    else:
        p = jnp.dot(h1_pv[:, :Hh], pw2_ref[...],
                    preferred_element_type=jnp.float32) + pb2_ref[...]
        v = jnp.dot(h1_pv[:, Hh:], vw2_ref[...],
                    preferred_element_type=jnp.float32) + vb2_ref[...]
        pv = jnp.concatenate([p, v], axis=-1)

    if k > 0:
        combined = jnp.concatenate([msg_k, pv], axis=-1)             # (Ne, H)
    else:
        combined = pv                                                # (Ne, H)

    # Scatter-sum over destination nodes (plain MXU dot, node-major one-hot).
    aggr = jnp.dot(dst_oh_t, combined, preferred_element_type=jnp.float32)  # (N, H)

    # node_mlp; layer 1 split over [x | aggr], x part already in proj.
    h_n = _leaky_relu(
        xn
        + jnp.dot(aggr, nw1a_ref[...], preferred_element_type=jnp.float32)
        + nb1_ref[...])
    out = _leaky_relu(
        jnp.dot(h_n, nw2_ref[...], preferred_element_type=jnp.float32)
        + nb2_ref[...])
    out_ref[...] = out.astype(out_ref.dtype)


def fuse_params(params, hidden_dim, *, pv_fuse_max_width=128):
    """One-time host-side parameter fusion (call at init, not per forward)."""
    (ew1, eb1, ew2, eb2, pw1, pb1, pw2, pb2,
     vw1, vb1, vw2, vb2, nw1, nb1, nw2, nb2) = params
    H = hidden_dim
    Hh = pw1.shape[1]
    k = H - 2 * Hh
    assert k >= 0, "reference semantics require hidden_dim >= 2 * (hidden_dim // 2)"

    if k > 0:
        first = (ew1, pw1, vw1)
        b1 = jnp.concatenate([eb1, pb1, vb1], axis=1)
    else:
        # edge_mlp output is fully discarded by the reference concat -> skip it.
        first = (pw1, vw1)
        b1 = jnp.concatenate([pb1, vb1], axis=1)
    w_src = jnp.concatenate([w[:H] for w in first], axis=1)          # (H, C1)
    w_dst = jnp.concatenate([w[H:2 * H] for w in first], axis=1)     # (H, C1)
    w_e = jnp.concatenate([w[2 * H:] for w in first], axis=1)        # (E, C1)
    C1 = w_src.shape[1]

    # One wide node-granularity matmul: x @ [W1_src | W1_dst | node_W1_x].
    w_x = jnp.concatenate([w_src, w_dst, nw1[:H]], axis=1)           # (H, 2*C1+H)
    nw1_a = nw1[H:]                                                  # (H, H)

    # Block-diagonal p/v second-layer fusion only while it fills one MXU tile.
    fuse_pv = (2 * Hh) <= pv_fuse_max_width

    ops = [w_x, w_e, b1]
    if k > 0:
        ops += [ew2[:, :k], eb2[:, :k]]      # only the surviving slice of edge_mlp L2
    if fuse_pv:
        zero = jnp.zeros((Hh, Hh), pw2.dtype)
        w2_pv = jnp.concatenate(
            [jnp.concatenate([pw2, zero], axis=1),
             jnp.concatenate([zero, vw2], axis=1)], axis=0)          # (2Hh, 2Hh)
        ops += [w2_pv, jnp.concatenate([pb2, vb2], axis=1)]
    else:
        ops += [pw2, pb2, vw2, vb2]
    ops += [nw1_a, nb1, nw2, nb2]

    return dict(H=H, Hh=Hh, C1=C1, k=k, fuse_pv=fuse_pv, ops=tuple(ops))


def prepare_edges(edge_index):
    """One-time host-side edge packing: (Ne,2) gather indices + (1,Ne) dst row."""
    src = edge_index[0].astype(jnp.int32)
    dst = edge_index[1].astype(jnp.int32)
    idx = jnp.stack([src, dst], axis=1)          # (Ne, 2) for the gather one-hots
    dst_row = dst.reshape(1, -1)                 # (1, Ne) for the transposed scatter one-hot
    return idx, dst_row


def message_passing_layer(x, idx, dst_row, edge_attr, fused):
    """x: (N,H) f32, idx: (Ne,2) int32, dst_row: (1,Ne) int32, edge_attr: (Ne,E) f32."""
    n_nodes, H = x.shape
    n_edges, edge_dim = edge_attr.shape
    Hh, C1, k, fuse_pv = fused["Hh"], fused["C1"], fused["k"], fused["fuse_pv"]
    inputs = (x, idx, dst_row, edge_attr) + fused["ops"]

    flops = 2 * (
        n_nodes * H * (2 * C1 + H)            # fused node-side projection
        + n_edges * edge_dim * C1             # edge_attr projection
        + 2 * n_edges * n_nodes * C1          # one-hot gathers
        + n_edges * (2 * Hh) * (2 * Hh)       # p/v second layer
        + (n_edges * H * k if k > 0 else 0)   # surviving edge_mlp slice
        + n_edges * n_nodes * H               # scatter-sum
        + n_nodes * H * H                     # node_mlp layer 1 (aggr part)
        + n_nodes * H * H                     # node_mlp layer 2
    )
    io_bytes = (sum(int(a.size) * a.dtype.itemsize for a in inputs)
                + n_nodes * H * x.dtype.itemsize)
    # Rough resident VMEM: operands + 3 f32 one-hots + main intermediates, x2 slack.
    resident = (io_bytes
                + 3 * n_edges * n_nodes * 4
                + n_edges * (C1 + H) * 4
                + n_nodes * (2 * C1 + 2 * H) * 4)
    vmem_limit = int(min(64 << 20, max(32 << 20, 2 * resident)))

    vmem = pl.BlockSpec(memory_space=pltpu.MemorySpace.VMEM)
    return pl.pallas_call(
        partial(_mp_kernel, H=H, Hh=Hh, C1=C1, k=k, fuse_pv=fuse_pv),
        out_shape=jax.ShapeDtypeStruct((n_nodes, H), x.dtype),
        in_specs=[vmem] * len(inputs),
        out_specs=vmem,
        compiler_params=pltpu.CompilerParams(vmem_limit_bytes=vmem_limit),
        cost_estimate=pl.CostEstimate(flops=flops, transcendentals=0,
                                      bytes_accessed=io_bytes),
    )(*inputs)


def make_params(key, hidden_dim, edge_dim):
    """Deterministic synthetic parameters.  Weights stored as (in, out); y = x @ W + b."""
    h, hh, din = hidden_dim, hidden_dim // 2, 2 * hidden_dim + edge_dim
    shapes = [
        # edge_mlp
        (din, h), (1, h), (h, h), (1, h),
        # p_edge_mlp
        (din, hh), (1, hh), (hh, hh), (1, hh),
        # v_edge_mlp
        (din, hh), (1, hh), (hh, hh), (1, hh),
        # node_mlp
        (2 * h, h), (1, h), (h, h), (1, h),
    ]
    keys = jax.random.split(key, len(shapes))
    params = []
    for kk, s in zip(keys, shapes):
        fan_in = s[0] if s[0] > 1 else s[1]
        params.append(jax.random.normal(kk, s, jnp.float32) * (1.0 / jnp.sqrt(fan_in)))
    return tuple(params)


def reference_forward(x, edge_index, edge_attr, params):
    (ew1, eb1, ew2, eb2, pw1, pb1, pw2, pb2,
     vw1, vb1, vw2, vb2, nw1, nb1, nw2, nb2) = params
    src, dst = edge_index[0], edge_index[1]
    mi = jnp.concatenate([x[src], x[dst], edge_attr], axis=-1)
    lrelu = lambda t: jnp.where(t > 0, t, NEG_SLOPE * t)
    messages = lrelu(lrelu(mi @ ew1 + eb1) @ ew2 + eb2)
    p = lrelu(mi @ pw1 + pb1) @ pw2 + pb2
    v = lrelu(mi @ vw1 + vb1) @ vw2 + vb2
    h = messages.shape[-1]
    k = h - p.shape[-1] - v.shape[-1]
    combined = jnp.concatenate([messages[:, :k], p, v], axis=1)
    aggr = jnp.zeros((x.shape[0], h), x.dtype).at[dst].add(combined)
    cf = jnp.concatenate([x, aggr], axis=-1)
    return lrelu(lrelu(cf @ nw1 + nb1) @ nw2 + nb2)


if __name__ == "__main__":
    HIDDEN_DIM = 32
    EDGE_DIM = 8
    N_NODES = 16
    N_EDGES = 32

    key = jax.random.PRNGKey(0)
    kx, ke, ki, kp = jax.random.split(key, 4)

    x = jax.random.normal(kx, (N_NODES, HIDDEN_DIM), jnp.float32)
    edge_attr = jax.random.normal(ke, (N_EDGES, EDGE_DIM), jnp.float32)
    edge_index = jax.random.randint(ki, (2, N_EDGES), 0, N_NODES, jnp.int32)
    params = make_params(kp, HIDDEN_DIM, EDGE_DIM)

    # Done once at init (hoisted off the per-call path, per review).
    fused = fuse_params(params, HIDDEN_DIM)
    idx, dst_row = prepare_edges(edge_index)

    out = jax.block_until_ready(
        message_passing_layer(x, idx, dst_row, edge_attr, fused))
    ref = jax.block_until_ready(reference_forward(x, edge_index, edge_attr, params))

    assert out.shape == (N_NODES, HIDDEN_DIM)
    assert jnp.allclose(out, ref, rtol=1e-4, atol=1e-4), "mismatch vs pure-JAX reference"

    print("KERNEL_OK")
</pallas_src>

<mosaic_0001>
module attributes {stable_mosaic.version = 11 : i64} {
  func.func @_mp_kernel(%arg0: memref<16x32xf32, #tpu.memory_space<vmem>>, %arg1: memref<32x2xi32, #tpu.memory_space<vmem>>, %arg2: memref<1x32xi32, #tpu.memory_space<vmem>>, %arg3: memref<32x8xf32, #tpu.memory_space<vmem>>, %arg4: memref<32x96xf32, #tpu.memory_space<vmem>>, %arg5: memref<8x32xf32, #tpu.memory_space<vmem>>, %arg6: memref<1x32xf32, #tpu.memory_space<vmem>>, %arg7: memref<32x32xf32, #tpu.memory_space<vmem>>, %arg8: memref<1x32xf32, #tpu.memory_space<vmem>>, %arg9: memref<32x32xf32, #tpu.memory_space<vmem>>, %arg10: memref<1x32xf32, #tpu.memory_space<vmem>>, %arg11: memref<32x32xf32, #tpu.memory_space<vmem>>, %arg12: memref<1x32xf32, #tpu.memory_space<vmem>>, %arg13: memref<16x32xf32, #tpu.memory_space<vmem>>) attributes {dimension_semantics = [], scalar_prefetch = 0 : i64, scratch_operands = 0 : i64, tpu.core_type = #tpu.core_type<tc>} {
    %c0 = arith.constant 0 : index
    %c0_0 = arith.constant 0 : index
    %0 = vector.load %arg0[%c0, %c0_0] : memref<16x32xf32, #tpu.memory_space<vmem>>, vector<16x32xf32>
    %c0_1 = arith.constant 0 : index
    %c0_2 = arith.constant 0 : index
    %1 = vector.load %arg3[%c0_1, %c0_2] : memref<32x8xf32, #tpu.memory_space<vmem>>, vector<32x8xf32>
    %c0_3 = arith.constant 0 : index
    %c0_4 = arith.constant 0 : index
    %2 = vector.load %arg1[%c0_3, %c0_4] : memref<32x2xi32, #tpu.memory_space<vmem>>, vector<32x2xi32>
    %3 = tpu.iota {dimensions = array<i32: 1>} : vector<32x16xi32>
    %4 = vector.extract_strided_slice %2 {offsets = [0, 0], sizes = [32, 1], strides = [1, 1]} : vector<32x2xi32> to vector<32x1xi32>
    %5 = vector.broadcast %4 : vector<32x1xi32> to vector<32x16xi32>
    %6 = arith.cmpi eq, %3, %5 : vector<32x16xi32>
    %7 = arith.extui %6 : vector<32x16xi1> to vector<32x16xi32>
    %8 = arith.sitofp %7 : vector<32x16xi32> to vector<32x16xf32>
    %9 = vector.extract_strided_slice %2 {offsets = [0, 1], sizes = [32, 1], strides = [1, 1]} : vector<32x2xi32> to vector<32x1xi32>
    %10 = vector.broadcast %9 : vector<32x1xi32> to vector<32x16xi32>
    %11 = arith.cmpi eq, %3, %10 : vector<32x16xi32>
    %12 = arith.extui %11 : vector<32x16xi1> to vector<32x16xi32>
    %13 = arith.sitofp %12 : vector<32x16xi32> to vector<32x16xf32>
    %14 = tpu.iota {dimensions = array<i32: 0>} : vector<16x32xi32>
    %c0_5 = arith.constant 0 : index
    %c0_6 = arith.constant 0 : index
    %15 = vector.load %arg2[%c0_5, %c0_6] : memref<1x32xi32, #tpu.memory_space<vmem>>, vector<1x32xi32>
    %16 = vector.broadcast %15 : vector<1x32xi32> to vector<16x32xi32>
    %17 = arith.cmpi eq, %14, %16 : vector<16x32xi32>
    %18 = arith.extui %17 : vector<16x32xi1> to vector<16x32xi32>
    %19 = arith.sitofp %18 : vector<16x32xi32> to vector<16x32xf32>
    %c0_7 = arith.constant 0 : index
    %c0_8 = arith.constant 0 : index
    %20 = vector.load %arg4[%c0_7, %c0_8] : memref<32x96xf32, #tpu.memory_space<vmem>>, vector<32x96xf32>
    %cst = arith.constant dense<0.000000e+00> : vector<16x96xf32>
    %21 = tpu.matmul %0, %20, %cst {dimension_numbers = #tpu.dot_dimension_numbers<[1], [0], [0], [1], [0, 0, 1, 1], [], []>} : vector<16x32xf32>, vector<32x96xf32>, vector<16x96xf32> -> vector<16x96xf32>
    %22 = vector.extract_strided_slice %21 {offsets = [0, 0], sizes = [16, 32], strides = [1, 1]} : vector<16x96xf32> to vector<16x32xf32>
    %23 = vector.extract_strided_slice %21 {offsets = [0, 32], sizes = [16, 32], strides = [1, 1]} : vector<16x96xf32> to vector<16x32xf32>
    %24 = vector.extract_strided_slice %21 {offsets = [0, 64], sizes = [16, 32], strides = [1, 1]} : vector<16x96xf32> to vector<16x32xf32>
    %cst_9 = arith.constant dense<0.000000e+00> : vector<32x32xf32>
    %25 = tpu.matmul %8, %22, %cst_9 {dimension_numbers = #tpu.dot_dimension_numbers<[1], [0], [0], [1], [0, 0, 1, 1], [], []>} : vector<32x16xf32>, vector<16x32xf32>, vector<32x32xf32> -> vector<32x32xf32>
    %cst_10 = arith.constant dense<0.000000e+00> : vector<32x32xf32>
    %26 = tpu.matmul %13, %23, %cst_10 {dimension_numbers = #tpu.dot_dimension_numbers<[1], [0], [0], [1], [0, 0, 1, 1], [], []>} : vector<32x16xf32>, vector<16x32xf32>, vector<32x32xf32> -> vector<32x32xf32>
    %27 = arith.addf %25, %26 : vector<32x32xf32>
    %c0_11 = arith.constant 0 : index
    %c0_12 = arith.constant 0 : index
    %28 = vector.load %arg5[%c0_11, %c0_12] : memref<8x32xf32, #tpu.memory_space<vmem>>, vector<8x32xf32>
    %cst_13 = arith.constant dense<0.000000e+00> : vector<32x32xf32>
    %29 = tpu.matmul %1, %28, %cst_13 {dimension_numbers = #tpu.dot_dimension_numbers<[1], [0], [0], [1], [0, 0, 1, 1], [], []>} : vector<32x8xf32>, vector<8x32xf32>, vector<32x32xf32> -> vector<32x32xf32>
    %30 = arith.addf %27, %29 : vector<32x32xf32>
    %c0_14 = arith.constant 0 : index
    %c0_15 = arith.constant 0 : index
    %31 = vector.load %arg6[%c0_14, %c0_15] : memref<1x32xf32, #tpu.memory_space<vmem>>, vector<1x32xf32>
    %32 = vector.broadcast %31 : vector<1x32xf32> to vector<32x32xf32>
    %33 = arith.addf %30, %32 : vector<32x32xf32>
    %cst_16 = arith.constant 0.000000e+00 : f32
    %34 = vector.broadcast %cst_16 : f32 to vector<32x32xf32>
    %35 = arith.cmpf ogt, %33, %34 : vector<32x32xf32>
    %cst_17 = arith.constant 0.00999999977 : f32
    %36 = vector.broadcast %cst_17 : f32 to vector<32x32xf32>
    %37 = arith.mulf %36, %33 : vector<32x32xf32>
    %38 = arith.select %35, %33, %37 : vector<32x32xi1>, vector<32x32xf32>
    %c0_18 = arith.constant 0 : index
    %c0_19 = arith.constant 0 : index
    %39 = vector.load %arg7[%c0_18, %c0_19] : memref<32x32xf32, #tpu.memory_space<vmem>>, vector<32x32xf32>
    %cst_20 = arith.constant dense<0.000000e+00> : vector<32x32xf32>
    %40 = tpu.matmul %38, %39, %cst_20 {dimension_numbers = #tpu.dot_dimension_numbers<[1], [0], [0], [1], [0, 0, 1, 1], [], []>} : vector<32x32xf32>, vector<32x32xf32>, vector<32x32xf32> -> vector<32x32xf32>
    %c0_21 = arith.constant 0 : index
    %c0_22 = arith.constant 0 : index
    %41 = vector.load %arg8[%c0_21, %c0_22] : memref<1x32xf32, #tpu.memory_space<vmem>>, vector<1x32xf32>
    %42 = vector.broadcast %41 : vector<1x32xf32> to vector<32x32xf32>
    %43 = arith.addf %40, %42 : vector<32x32xf32>
    %cst_23 = arith.constant dense<0.000000e+00> : vector<16x32xf32>
    %44 = tpu.matmul %19, %43, %cst_23 {dimension_numbers = #tpu.dot_dimension_numbers<[1], [0], [0], [1], [0, 0, 1, 1], [], []>} : vector<16x32xf32>, vector<32x32xf32>, vector<16x32xf32> -> vector<16x32xf32>
    %c0_24 = arith.constant 0 : index
    %c0_25 = arith.constant 0 : index
    %45 = vector.load %arg9[%c0_24, %c0_25] : memref<32x32xf32, #tpu.memory_space<vmem>>, vector<32x32xf32>
    %cst_26 = arith.constant dense<0.000000e+00> : vector<16x32xf32>
    %46 = tpu.matmul %44, %45, %cst_26 {dimension_numbers = #tpu.dot_dimension_numbers<[1], [0], [0], [1], [0, 0, 1, 1], [], []>} : vector<16x32xf32>, vector<32x32xf32>, vector<16x32xf32> -> vector<16x32xf32>
    %47 = arith.addf %24, %46 : vector<16x32xf32>
    %c0_27 = arith.constant 0 : index
    %c0_28 = arith.constant 0 : index
    %48 = vector.load %arg10[%c0_27, %c0_28] : memref<1x32xf32, #tpu.memory_space<vmem>>, vector<1x32xf32>
    %49 = vector.broadcast %48 : vector<1x32xf32> to vector<16x32xf32>
    %50 = arith.addf %47, %49 : vector<16x32xf32>
    %cst_29 = arith.constant 0.000000e+00 : f32
    %51 = vector.broadcast %cst_29 : f32 to vector<16x32xf32>
    %52 = arith.cmpf ogt, %50, %51 : vector<16x32xf32>
    %cst_30 = arith.constant 0.00999999977 : f32
    %53 = vector.broadcast %cst_30 : f32 to vector<16x32xf32>
    %54 = arith.mulf %53, %50 : vector<16x32xf32>
    %55 = arith.select %52, %50, %54 : vector<16x32xi1>, vector<16x32xf32>
    %c0_31 = arith.constant 0 : index
    %c0_32 = arith.constant 0 : index
    %56 = vector.load %arg11[%c0_31, %c0_32] : memref<32x32xf32, #tpu.memory_space<vmem>>, vector<32x32xf32>
    %cst_33 = arith.constant dense<0.000000e+00> : vector<16x32xf32>
    %57 = tpu.matmul %55, %56, %cst_33 {dimension_numbers = #tpu.dot_dimension_numbers<[1], [0], [0], [1], [0, 0, 1, 1], [], []>} : vector<16x32xf32>, vector<32x32xf32>, vector<16x32xf32> -> vector<16x32xf32>
    %c0_34 = arith.constant 0 : index
    %c0_35 = arith.constant 0 : index
    %58 = vector.load %arg12[%c0_34, %c0_35] : memref<1x32xf32, #tpu.memory_space<vmem>>, vector<1x32xf32>
    %59 = vector.broadcast %58 : vector<1x32xf32> to vector<16x32xf32>
    %60 = arith.addf %57, %59 : vector<16x32xf32>
    %cst_36 = arith.constant 0.000000e+00 : f32
    %61 = vector.broadcast %cst_36 : f32 to vector<16x32xf32>
    %62 = arith.cmpf ogt, %60, %61 : vector<16x32xf32>
    %cst_37 = arith.constant 0.00999999977 : f32
    %63 = vector.broadcast %cst_37 : f32 to vector<16x32xf32>
    %64 = arith.mulf %63, %60 : vector<16x32xf32>
    %65 = arith.select %62, %60, %64 : vector<16x32xi1>, vector<16x32xf32>
    %c0_38 = arith.constant 0 : index
    %c0_39 = arith.constant 0 : index
    %66 = vector.load %arg13[%c0_38, %c0_39] : memref<16x32xf32, #tpu.memory_space<vmem>>, vector<16x32xf32>
    tpu.vector_store %arg13[%c0_38, %c0_39], %65 {strides = array<i32>} : memref<16x32xf32, #tpu.memory_space<vmem>>, vector<16x32xf32>,
    return
  }
}

</mosaic_0001>

<llo_original>
// kernel: tpu_custom_call.1
$region0: #{tpu_custom_call.1}
  #allocation0 [shape = 'u32[]', space=smem, size = 0x4, offset = 0x4, fixed_abs, tag = 'smem constant byte address 0x4 - core index']
  #allocation1 [shape = 'u32[144,128]{1,0:T(1,128)}', space=vmem, size = 0x12000, scoped, tag = 'internal scratch']
  %s0 = inlined_call_operand.hbm [shape: f32[16,32], index: 0, kind: input, shape index: {}]
  %s1 = inlined_call_operand.vmem [shape: s32[32,2], index: 1, kind: input, shape index: {}]
  %s2 = inlined_call_operand.vmem [shape: s32[1,32], index: 2, kind: input, shape index: {}]
  %s3 = inlined_call_operand.vmem [shape: f32[32,8], index: 3, kind: input, shape index: {}]
  %s4 = inlined_call_operand.vmem [shape: f32[32,96], index: 4, kind: input, shape index: {}]
  %s5 = inlined_call_operand.vmem [shape: f32[8,32], index: 5, kind: input, shape index: {}]
  %s6 = inlined_call_operand.vmem [shape: f32[1,32], index: 6, kind: input, shape index: {}]
  %s7 = inlined_call_operand.vmem [shape: f32[32,32], index: 7, kind: input, shape index: {}]
  %s8 = inlined_call_operand.vmem [shape: f32[1,32], index: 8, kind: input, shape index: {}]
  %s9 = inlined_call_operand.hbm [shape: f32[32,32], index: 9, kind: input, shape index: {}]
  %s10 = inlined_call_operand.vmem [shape: f32[1,32], index: 10, kind: input, shape index: {}]
  %s11 = inlined_call_operand.hbm [shape: f32[32,32], index: 11, kind: input, shape index: {}]
  %s12 = inlined_call_operand.vmem [shape: f32[1,32], index: 12, kind: input, shape index: {}]
  %s13 = inlined_call_operand.hbm [shape: f32[16,32], index: 13, kind: output, shape index: {}]
  %s14 = sld [smem:[#allocation0]]
  $region74: #{tpu_custom_call.1} parent=0
    _
  %s16 = ssub.s32 1, %s14
  %s17 = scalar_select 0, %s16, %s14
  $region1: #{tpu_custom_call.1} parent=0
    #allocation2 [shape = 'u8[8192]{0}', space=vmem, size = 0x2000, scoped, tag = 'input window, operand 0, single buffered']
    #allocation3 [shape = 's32[1]{0}', space=sflag, size = 0x4, scoped, tag = 'scoped memory for tpu_custom_call.1']
    #allocation4 [shape = 's32[1]{0}', space=sflag, size = 0x4, scoped, tag = 'scoped memory for tpu_custom_call.1']
    #allocation5 [shape = 'u8[16384]{0}', space=vmem, size = 0x4000, scoped, tag = 'input window, operand 9, single buffered']
    #allocation6 [shape = 's32[1]{0}', space=sflag, size = 0x4, scoped, tag = 'scoped memory for tpu_custom_call.1']
    #allocation7 [shape = 'u8[16384]{0}', space=vmem, size = 0x4000, scoped, tag = 'input window, operand 11, single buffered']
    #allocation8 [shape = 'u8[8192]{0}', space=vmem, size = 0x2000, scoped, tag = 'output window, operand 0, single buffered']
    %18 = vsyncpa [#allocation3], 0
    %19 = vsyncpa [#allocation6], 0
    %20 = vsyncpa [#allocation4], 0
    // Predicated region
    $region2: #{tpu_custom_call.1} parent=1 // pred_check
      _
    $region3: #{tpu_custom_call.1} parent=1 // pred_check_branch
      %22 = sbr.rel (0) target = $region5
    $region4: #{tpu_custom_call.1} parent=1 // pred_region
      %s24 = ssub.s32 256, 256
      %25 = vsyncadd [#allocation3], %s24
      %s26 = sshll.u32 [#allocation2], 4
      %s27 = int_to_ptr.vmem [resolvable:$true] %s26
      %32 = dma.hbm_to_vmem [thread:$0]  %s0, 256, %s27, [#allocation3], 128, 128, 8
    $region5: #{tpu_custom_call.1} parent=1 // pred_fallthru
      _
    // Predicated region
    $region6: #{tpu_custom_call.1} parent=1 // pred_check
      _
    $region7: #{tpu_custom_call.1} parent=1 // pred_check_branch
      %34 = sbr.rel (0) target = $region9
    $region8: #{tpu_custom_call.1} parent=1 // pred_region
      _
    $region9: #{tpu_custom_call.1} parent=1 // pred_fallthru
      _
    // Predicated region
    $region10: #{tpu_custom_call.1} parent=1 // pred_check
      _
    $region11: #{tpu_custom_call.1} parent=1 // pred_check_branch
      %36 = sbr.rel (0) target = $region13
    $region12: #{tpu_custom_call.1} parent=1 // pred_region
      _
    $region13: #{tpu_custom_call.1} parent=1 // pred_fallthru
      _
    // Predicated region
    $region14: #{tpu_custom_call.1} parent=1 // pred_check
      _
    $region15: #{tpu_custom_call.1} parent=1 // pred_check_branch
      %38 = sbr.rel (0) target = $region17
    $region16: #{tpu_custom_call.1} parent=1 // pred_region
      _
    $region17: #{tpu_custom_call.1} parent=1 // pred_fallthru
      _
    // Predicated region
    $region18: #{tpu_custom_call.1} parent=1 // pred_check
      _
    $region19: #{tpu_custom_call.1} parent=1 // pred_check_branch
      %40 = sbr.rel (0) target = $region21
    $region20: #{tpu_custom_call.1} parent=1 // pred_region
      _
    $region21: #{tpu_custom_call.1} parent=1 // pred_fallthru
      _
    // Predicated region
    $region22: #{tpu_custom_call.1} parent=1 // pred_check
      _
    $region23: #{tpu_custom_call.1} parent=1 // pred_check_branch
      %42 = sbr.rel (0) target = $region25
    $region24: #{tpu_custom_call.1} parent=1 // pred_region
      _
    $region25: #{tpu_custom_call.1} parent=1 // pred_fallthru
      _
    // Predicated region
    $region26: #{tpu_custom_call.1} parent=1 // pred_check
      _
    $region27: #{tpu_custom_call.1} parent=1 // pred_check_branch
      %44 = sbr.rel (0) target = $region29
    $region28: #{tpu_custom_call.1} parent=1 // pred_region
      _
    $region29: #{tpu_custom_call.1} parent=1 // pred_fallthru
      _
    // Predicated region
    $region30: #{tpu_custom_call.1} parent=1 // pred_check
      _
    $region31: #{tpu_custom_call.1} parent=1 // pred_check_branch
      %46 = sbr.rel (0) target = $region33
    $region32: #{tpu_custom_call.1} parent=1 // pred_region
      _
    $region33: #{tpu_custom_call.1} parent=1 // pred_fallthru
      _
    // Predicated region
    $region34: #{tpu_custom_call.1} parent=1 // pred_check
      _
    $region35: #{tpu_custom_call.1} parent=1 // pred_check_branch
      %48 = sbr.rel (0) target = $region37
    $region36: #{tpu_custom_call.1} parent=1 // pred_region
      _
    $region37: #{tpu_custom_call.1} parent=1 // pred_fallthru
      _
    // Predicated region
    $region38: #{tpu_custom_call.1} parent=1 // pred_check
      _
    $region39: #{tpu_custom_call.1} parent=1 // pred_check_branch
      %50 = sbr.rel (0) target = $region41
    $region40: #{tpu_custom_call.1} parent=1 // pred_region
      %s52 = ssub.s32 512, 512
      %53 = vsyncadd [#allocation6], %s52
      %s54 = sshll.u32 [#allocation5], 4
      %s55 = int_to_ptr.vmem [resolvable:$true] %s54
      %60 = dma.hbm_to_vmem [thread:$0]  %s9, 512, %s55, [#allocation6], 128, 128, 8
    $region41: #{tpu_custom_call.1} parent=1 // pred_fallthru
      _
    // Predicated region
    $region42: #{tpu_custom_call.1} parent=1 // pred_check
      _
    $region43: #{tpu_custom_call.1} parent=1 // pred_check_branch
      %62 = sbr.rel (0) target = $region45
    $region44: #{tpu_custom_call.1} parent=1 // pred_region
      _
    $region45: #{tpu_custom_call.1} parent=1 // pred_fallthru
      _
    // Predicated region
    $region46: #{tpu_custom_call.1} parent=1 // pred_check
      _
    $region47: #{tpu_custom_call.1} parent=1 // pred_check_branch
      %64 = sbr.rel (0) target = $region49
    $region48: #{tpu_custom_call.1} parent=1 // pred_region
      %s66 = ssub.s32 512, 512
      %67 = vsyncadd [#allocation6], %s66
      %s68 = sshll.u32 [#allocation7], 4
      %s69 = int_to_ptr.vmem [resolvable:$true] %s68
      %74 = dma.hbm_to_vmem [thread:$0]  %s11, 512, %s69, [#allocation6], 128, 128, 8
    $region49: #{tpu_custom_call.1} parent=1 // pred_fallthru
      _
    // Predicated region
    $region50: #{tpu_custom_call.1} parent=1 // pred_check
      _
    $region51: #{tpu_custom_call.1} parent=1 // pred_check_branch
      %76 = sbr.rel (0) target = $region53
    $region52: #{tpu_custom_call.1} parent=1 // pred_region
      _
    $region53: #{tpu_custom_call.1} parent=1 // pred_fallthru
      _
    // Predicated region
    $region54: #{tpu_custom_call.1} parent=1 // pred_check
      _
    $region55: #{tpu_custom_call.1} parent=1 // pred_check_branch
      %78 = sbr.rel (0) target = $region57
    $region56: #{tpu_custom_call.1} parent=1 // pred_region
      %79 = dma.done [#allocation3], 256
    $region57: #{tpu_custom_call.1} parent=1 // pred_fallthru
      _
    // Predicated region
    $region58: #{tpu_custom_call.1} parent=1 // pred_check
      _
    $region59: #{tpu_custom_call.1} parent=1 // pred_check_branch
      %81 = sbr.rel (0) target = $region61
    $region60: #{tpu_custom_call.1} parent=1 // pred_region
      %82 = dma.done [#allocation6], 512
    $region61: #{tpu_custom_call.1} parent=1 // pred_fallthru
      _
    // Predicated region
    $region62: #{tpu_custom_call.1} parent=1 // pred_check
      _
    $region63: #{tpu_custom_call.1} parent=1 // pred_check_branch
      %84 = sbr.rel (0) target = $region65
    $region64: #{tpu_custom_call.1} parent=1 // pred_region
      %85 = dma.done [#allocation6], 512
    $region65: #{tpu_custom_call.1} parent=1 // pred_fallthru
      _
    %v86 = vld [vmem:[#allocation2] sm:$0xff]
    %v87 = vld [vmem:[#allocation2 + $0x8] sm:$0xff]
    %v88 = vld [vmem:[%s3] sm:$0xff]
    %v89 = vld [vmem:[%s3 + $0x8] sm:$0xff]
    %v90 = vld [vmem:[%s3 + $0x10] sm:$0xff]
    %v91 = vld [vmem:[%s3 + $0x18] sm:$0xff]
    %v92 = vld [vmem:[%s1] sm:$0xff]
    %v93 = vld [vmem:[%s1 + $0x8] sm:$0xff]
    %v94 = vld [vmem:[%s1 + $0x10] sm:$0xff]
    %v95 = vld [vmem:[%s1 + $0x18] sm:$0xff]
    %v96 = vlaneseq
    %v97 = vand.u32 %v96, 127
    %98 = vset.pattern.permute.xlu0 0
    %99 = vperm.xlu0 %98, %v92
    %v100 = vpop.permute.xlu0 %99
    %101 = vset.pattern.permute.xlu0 0
    %102 = vperm.xlu0 %101, %v93
    %v103 = vpop.permute.xlu0 %102
    %104 = vset.pattern.permute.xlu0 0
    %105 = vperm.xlu0 %104, %v94
    %v106 = vpop.permute.xlu0 %105
    %107 = vset.pattern.permute.xlu0 0
    %108 = vperm.xlu0 %107, %v95
    %v109 = vpop.permute.xlu0 %108
    %vm110 = vcmp.eq.s32.totalorder %v97, %v100
    %vm111 = vcmp.eq.s32.totalorder %v97, %v103
    %vm112 = vcmp.eq.s32.totalorder %v97, %v106
    %vm113 = vcmp.eq.s32.totalorder %v97, %v109
    %v114 = vsel %vm110, 1, 0
    %v115 = vsel %vm111, 1, 0
    %v116 = vsel %vm112, 1, 0
    %v117 = vsel %vm113, 1, 0
    %v118 = vcvt.s32.f32 %v114
    %v119 = vcvt.s32.f32 %v115
    %v120 = vcvt.s32.f32 %v116
    %v121 = vcvt.s32.f32 %v117
    %122 = vset.pattern.permute.xlu0 1
    %123 = vperm.xlu0 %122, %v92
    %v124 = vpop.permute.xlu0 %123
    %125 = vset.pattern.permute.xlu0 1
    %126 = vperm.xlu0 %125, %v93
    %v127 = vpop.permute.xlu0 %126
    %128 = vset.pattern.permute.xlu0 1
    %129 = vperm.xlu0 %128, %v94
    %v130 = vpop.permute.xlu0 %129
    %131 = vset.pattern.permute.xlu0 1
    %132 = vperm.xlu0 %131, %v95
    %v133 = vpop.permute.xlu0 %132
    %vm134 = vcmp.eq.s32.totalorder %v97, %v124
    %vm135 = vcmp.eq.s32.totalorder %v97, %v127
    %vm136 = vcmp.eq.s32.totalorder %v97, %v130
    %vm137 = vcmp.eq.s32.totalorder %v97, %v133
    %v138 = vsel %vm134, 1, 0
    %v139 = vsel %vm135, 1, 0
    %v140 = vsel %vm136, 1, 0
    %v141 = vsel %vm137, 1, 0
    %v142 = vcvt.s32.f32 %v138
    %v143 = vcvt.s32.f32 %v139
    %v144 = vcvt.s32.f32 %v140
    %v145 = vcvt.s32.f32 %v141
    %v146 = vlaneseq
    %v147 = vshrl.u32 %v146, 7
    %v148 = vadd.s32 %v147, 8
    %v149 = vld [vmem:[%s2] sm:$0x1]
    %v150 = vlaneseq
    %v151 = vshrl.u32 %v150, 7
    %v152 = vsub.s32 0, %v151
    %v153 = vrot.slane %v149, %v152
    %vm154 = vcmp.eq.s32.totalorder %v147, %v153
    %vm155 = vcmp.eq.s32.totalorder %v148, %v153
    %v156 = vsel %vm154, 1, 0
    %v157 = vsel %vm155, 1, 0
    %v158 = vcvt.s32.f32 %v156
    %v159 = vcvt.s32.f32 %v157
    %v160 = vld [vmem:[%s4] sm:$0xff]
    %v161 = vld [vmem:[%s4 + $0x8] sm:$0xff]
    %v162 = vld [vmem:[%s4 + $0x10] sm:$0xff]
    %v163 = vld [vmem:[%s4 + $0x18] sm:$0xff]
    %vm164 = vcmask 261120
    %v166 = vsel %vm164, %v86, 0
    %v169 = vsel %vm164, %v87, 0
    %171 = vmatprep.subr.mxu0 0.0
    %172 = vmatpush1.msra.mxu0 0.0
    %173 = vmatprep.subr.mxu0 0.0
    %174 = vmatpush1.msra.mxu0 0.0
    %175 = vmatprep.subr.mxu0 0.0
    %176 = vmatpush1.msra.mxu0 0.0
    %177 = vmatprep.subr.mxu0 0.0
    %178 = vmatpush1.msra.mxu0 0.0
    %179 = vmatprep.subr.mxu0 0.0
    %180 = vmatpush1.msra.mxu0 0.0
    %181 = vmatprep.subr.mxu0 0.0
    %182 = vmatpush1.msra.mxu0 0.0
    %183 = vmatprep.subr.mxu0 0.0
    %184 = vmatpush1.msra.mxu0 0.0
    %185 = vmatprep.subr.mxu0 0.0
    %186 = vmatpush1.msra.mxu0 0.0
    %187 = vmatprep.subr.mxu0 0.0
    %188 = vmatpush1.msra.mxu0 0.0
    %189 = vmatprep.subr.mxu0 0.0
    %190 = vmatpush1.msra.mxu0 0.0
    %191 = vmatprep.subr.mxu0 0.0
    %192 = vmatpush1.msra.mxu0 0.0
    %193 = vmatprep.subr.mxu0 0.0
    %194 = vmatpush1.msra.mxu0 0.0
    %195 = vmatprep.subr.mxu0 0.0
    %196 = vmatpush1.msra.mxu0 %v163
    %197 = vmatprep.subr.mxu0 0.0
    %198 = vmatpush1.msra.mxu0 %v162
    %199 = vmatprep.subr.mxu0 0.0
    %200 = vmatpush1.msra.mxu0 %v161
    %201 = vmatprep.subr.mxu0 0.0
    %202 = vmatpush1.msra.mxu0 %v160
    %203 = vmatprep.subr.mxu0 0.0
    %204 = vmatpush2.msra.mxu0 0.0
    %205 = vmatprep.subr.mxu0 0.0
    %206 = vmatpush2.msra.mxu0 0.0
    %207 = vmatprep.subr.mxu0 0.0
    %208 = vmatpush2.msra.mxu0 0.0
    %209 = vmatprep.subr.mxu0 0.0
    %210 = vmatpush2.msra.mxu0 0.0
    %211 = vmatprep.subr.mxu0 0.0
    %212 = vmatpush2.msra.mxu0 0.0
    %213 = vmatprep.subr.mxu0 0.0
    %214 = vmatpush2.msra.mxu0 0.0
    %215 = vmatprep.subr.mxu0 0.0
    %216 = vmatpush2.msra.mxu0 0.0
    %217 = vmatprep.subr.mxu0 0.0
    %218 = vmatpush2.msra.mxu0 0.0
    %219 = vmatprep.subr.mxu0 0.0
    %220 = vmatpush2.msra.mxu0 0.0
    %221 = vmatprep.subr.mxu0 0.0
    %222 = vmatpush2.msra.mxu0 0.0
    %223 = vmatprep.subr.mxu0 0.0
    %224 = vmatpush2.msra.mxu0 0.0
    %225 = vmatprep.subr.mxu0 0.0
    %226 = vmatpush2.msra.mxu0 0.0
    %227 = vmatprep.subr.mxu0 0.0
    %228 = vmatpush2.msra.mxu0 0.0
    %229 = vmatprep.subr.mxu0 0.0
    %230 = vmatpush2.msra.mxu0 0.0
    %231 = vmatprep.subr.mxu0 0.0
    %232 = vmatpush2.msra.mxu0 0.0
    %233 = vmatprep.subr.mxu0 0.0
    %234 = vmatpush2.msra.mxu0 0.0
    %235 = vmatprep.mubr.f32.mxu0 0.0
    %236 = vmatmul.mubr.f32.gmra.mxu0 %v166
    %v237 = vpop.f32.mrf.mxu0
    %v238 = vadd.f32 0.0, %v237
    %v239 = vpop.f32.mrf.mxu0
    %240 = vmatprep.mubr.f32.mxu0 0.0
    %241 = vmatmul.mubr.f32.gmra.mxu0 %v169
    %v242 = vpop.f32.mrf.mxu0
    %v243 = vadd.f32 0.0, %v242
    %v244 = vpop.f32.mrf.mxu0
    %245 = vdwg.mxu0
    %248 = vrot.lane.b32.xlu0 %v238, 96
    %v249 = vpop.permute.xlu0 %248
    %250 = vrot.lane.b32.xlu0 %v243, 96
    %v251 = vpop.permute.xlu0 %250
    %vm254 = vcmask 130048
    %v256 = vsel %vm254, %v142, 0
    %v259 = vsel %vm254, %v143, 0
    %v262 = vsel %vm254, %v144, 0
    %v265 = vsel %vm254, %v145, 0
    %267 = vmatprep.subr.mxu0 0.0
    %268 = vmatpush1.msra.mxu0 0.0
    %269 = vmatprep.subr.mxu0 0.0
    %270 = vmatpush1.msra.mxu0 0.0
    %271 = vmatprep.subr.mxu0 0.0
    %272 = vmatpush1.msra.mxu0 0.0
    %273 = vmatprep.subr.mxu0 0.0
    %274 = vmatpush1.msra.mxu0 0.0
    %275 = vmatprep.subr.mxu0 0.0
    %276 = vmatpush1.msra.mxu0 0.0
    %277 = vmatprep.subr.mxu0 0.0
    %278 = vmatpush1.msra.mxu0 0.0
    %279 = vmatprep.subr.mxu0 0.0
    %280 = vmatpush1.msra.mxu0 0.0
    %281 = vmatprep.subr.mxu0 0.0
    %282 = vmatpush1.msra.mxu0 0.0
    %283 = vmatprep.subr.mxu0 0.0
    %284 = vmatpush1.msra.mxu0 0.0
    %285 = vmatprep.subr.mxu0 0.0
    %286 = vmatpush1.msra.mxu0 0.0
    %287 = vmatprep.subr.mxu0 0.0
    %288 = vmatpush1.msra.mxu0 0.0
    %289 = vmatprep.subr.mxu0 0.0
    %290 = vmatpush1.msra.mxu0 0.0
    %291 = vmatprep.subr.mxu0 0.0
    %292 = vmatpush1.msra.mxu0 0.0
    %293 = vmatprep.subr.mxu0 0.0
    %294 = vmatpush1.msra.mxu0 0.0
    %295 = vmatprep.subr.mxu0 0.0
    %296 = vmatpush1.msra.mxu0 %v251
    %297 = vmatprep.subr.mxu0 0.0
    %298 = vmatpush1.msra.mxu0 %v249
    %299 = vmatprep.subr.mxu0 0.0
    %300 = vmatpush2.msra.mxu0 0.0
    %301 = vmatprep.subr.mxu0 0.0
    %302 = vmatpush2.msra.mxu0 0.0
    %303 = vmatprep.subr.mxu0 0.0
    %304 = vmatpush2.msra.mxu0 0.0
    %305 = vmatprep.subr.mxu0 0.0
    %306 = vmatpush2.msra.mxu0 0.0
    %307 = vmatprep.subr.mxu0 0.0
    %308 = vmatpush2.msra.mxu0 0.0
    %309 = vmatprep.subr.mxu0 0.0
    %310 = vmatpush2.msra.mxu0 0.0
    %311 = vmatprep.subr.mxu0 0.0
    %312 = vmatpush2.msra.mxu0 0.0
    %313 = vmatprep.subr.mxu0 0.0
    %314 = vmatpush2.msra.mxu0 0.0
    %315 = vmatprep.subr.mxu0 0.0
    %316 = vmatpush2.msra.mxu0 0.0
    %317 = vmatprep.subr.mxu0 0.0
    %318 = vmatpush2.msra.mxu0 0.0
    %319 = vmatprep.subr.mxu0 0.0
    %320 = vmatpush2.msra.mxu0 0.0
    %321 = vmatprep.subr.mxu0 0.0
    %322 = vmatpush2.msra.mxu0 0.0
    %323 = vmatprep.subr.mxu0 0.0
    %324 = vmatpush2.msra.mxu0 0.0
    %325 = vmatprep.subr.mxu0 0.0
    %326 = vmatpush2.msra.mxu0 0.0
    %327 = vmatprep.subr.mxu0 0.0
    %328 = vmatpush2.msra.mxu0 0.0
    %329 = vmatprep.subr.mxu0 0.0
    %330 = vmatpush2.msra.mxu0 0.0
    %331 = vmatprep.mubr.f32.mxu0 0.0
    %332 = vmatmul.mubr.f32.gmra.mxu0 %v256
    %v333 = vpop.f32.mrf.mxu0
    %v334 = vadd.f32 0.0, %v333
    %v335 = vpop.f32.mrf.mxu0
    %336 = vmatprep.mubr.f32.mxu0 0.0
    %337 = vmatmul.mubr.f32.gmra.mxu0 %v259
    %v338 = vpop.f32.mrf.mxu0
    %v339 = vadd.f32 0.0, %v338
    %v340 = vpop.f32.mrf.mxu0
    %341 = vmatprep.mubr.f32.mxu0 0.0
    %342 = vmatmul.mubr.f32.gmra.mxu0 %v262
    %v343 = vpop.f32.mrf.mxu0
    %v344 = vadd.f32 0.0, %v343
    %v345 = vpop.f32.mrf.mxu0
    %346 = vmatprep.mubr.f32.mxu0 0.0
    %347 = vmatmul.mubr.f32.gmra.mxu0 %v265
    %v348 = vpop.f32.mrf.mxu0
    %v349 = vadd.f32 0.0, %v348
    %v350 = vpop.f32.mrf.mxu0
    %351 = vdwg.mxu0
    %v353 = vsel %vm254, %v118, 0
    %v356 = vsel %vm254, %v119, 0
    %v359 = vsel %vm254, %v120, 0
    %v362 = vsel %vm254, %v121, 0
    %364 = vmatprep.subr.mxu0 0.0
    %365 = vmatpush1.msra.mxu0 0.0
    %366 = vmatprep.subr.mxu0 0.0
    %367 = vmatpush1.msra.mxu0 0.0
    %368 = vmatprep.subr.mxu0 0.0
    %369 = vmatpush1.msra.mxu0 0.0
    %370 = vmatprep.subr.mxu0 0.0
    %371 = vmatpush1.msra.mxu0 0.0
    %372 = vmatprep.subr.mxu0 0.0
    %373 = vmatpush1.msra.mxu0 0.0
    %374 = vmatprep.subr.mxu0 0.0
    %375 = vmatpush1.msra.mxu0 0.0
    %376 = vmatprep.subr.mxu0 0.0
    %377 = vmatpush1.msra.mxu0 0.0
    %378 = vmatprep.subr.mxu0 0.0
    %379 = vmatpush1.msra.mxu0 0.0
    %380 = vmatprep.subr.mxu0 0.0
    %381 = vmatpush1.msra.mxu0 0.0
    %382 = vmatprep.subr.mxu0 0.0
    %383 = vmatpush1.msra.mxu0 0.0
    %384 = vmatprep.subr.mxu0 0.0
    %385 = vmatpush1.msra.mxu0 0.0
    %386 = vmatprep.subr.mxu0 0.0
    %387 = vmatpush1.msra.mxu0 0.0
    %388 = vmatprep.subr.mxu0 0.0
    %389 = vmatpush1.msra.mxu0 0.0
    %390 = vmatprep.subr.mxu0 0.0
    %391 = vmatpush1.msra.mxu0 0.0
    %392 = vmatprep.subr.mxu0 0.0
    %393 = vmatpush1.msra.mxu0 %v243
    %394 = vmatprep.subr.mxu0 0.0
    %395 = vmatpush1.msra.mxu0 %v238
    %396 = vmatprep.subr.mxu0 0.0
    %397 = vmatpush2.msra.mxu0 0.0
    %398 = vmatprep.subr.mxu0 0.0
    %399 = vmatpush2.msra.mxu0 0.0
    %400 = vmatprep.subr.mxu0 0.0
    %401 = vmatpush2.msra.mxu0 0.0
    %402 = vmatprep.subr.mxu0 0.0
    %403 = vmatpush2.msra.mxu0 0.0
    %404 = vmatprep.subr.mxu0 0.0
    %405 = vmatpush2.msra.mxu0 0.0
    %406 = vmatprep.subr.mxu0 0.0
    %407 = vmatpush2.msra.mxu0 0.0
    %408 = vmatprep.subr.mxu0 0.0
    %409 = vmatpush2.msra.mxu0 0.0
    %410 = vmatprep.subr.mxu0 0.0
    %411 = vmatpush2.msra.mxu0 0.0
    %412 = vmatprep.subr.mxu0 0.0
    %413 = vmatpush2.msra.mxu0 0.0
    %414 = vmatprep.subr.mxu0 0.0
    %415 = vmatpush2.msra.mxu0 0.0
    %416 = vmatprep.subr.mxu0 0.0
    %417 = vmatpush2.msra.mxu0 0.0
    %418 = vmatprep.subr.mxu0 0.0
    %419 = vmatpush2.msra.mxu0 0.0
    %420 = vmatprep.subr.mxu0 0.0
    %421 = vmatpush2.msra.mxu0 0.0
    %422 = vmatprep.subr.mxu0 0.0
    %423 = vmatpush2.msra.mxu0 0.0
    %424 = vmatprep.subr.mxu0 0.0
    %425 = vmatpush2.msra.mxu0 0.0
    %426 = vmatprep.subr.mxu0 0.0
    %427 = vmatpush2.msra.mxu0 0.0
    %428 = vmatprep.mubr.f32.mxu0 0.0
    %429 = vmatmul.mubr.f32.gmra.mxu0 %v353
    %v430 = vpop.f32.mrf.mxu0
    %v431 = vadd.f32 %v334, %v430
    %v432 = vpop.f32.mrf.mxu0
    %433 = vmatprep.mubr.f32.mxu0 0.0
    %434 = vmatmul.mubr.f32.gmra.mxu0 %v356
    %v435 = vpop.f32.mrf.mxu0
    %v436 = vadd.f32 %v339, %v435
    %v437 = vpop.f32.mrf.mxu0
    %438 = vmatprep.mubr.f32.mxu0 0.0
    %439 = vmatmul.mubr.f32.gmra.mxu0 %v359
    %v440 = vpop.f32.mrf.mxu0
    %v441 = vadd.f32 %v344, %v440
    %v442 = vpop.f32.mrf.mxu0
    %443 = vmatprep.mubr.f32.mxu0 0.0
    %444 = vmatmul.mubr.f32.gmra.mxu0 %v362
    %v445 = vpop.f32.mrf.mxu0
    %v446 = vadd.f32 %v349, %v445
    %v447 = vpop.f32.mrf.mxu0
    %448 = vdwg.mxu0
    %v449 = vld [vmem:[%s5] sm:$0xff]
    %vm450 = vcmask 64512
    %v452 = vsel %vm450, %v88, 0
    %v455 = vsel %vm450, %v89, 0
    %v458 = vsel %vm450, %v90, 0
    %v461 = vsel %vm450, %v91, 0
    %463 = vmatprep.subr.mxu0 0.0
    %464 = vmatpush1.msra.mxu0 0.0
    %465 = vmatprep.subr.mxu0 0.0
    %466 = vmatpush1.msra.mxu0 0.0
    %467 = vmatprep.subr.mxu0 0.0
    %468 = vmatpush1.msra.mxu0 0.0
    %469 = vmatprep.subr.mxu0 0.0
    %470 = vmatpush1.msra.mxu0 0.0
    %471 = vmatprep.subr.mxu0 0.0
    %472 = vmatpush1.msra.mxu0 0.0
    %473 = vmatprep.subr.mxu0 0.0
    %474 = vmatpush1.msra.mxu0 0.0
    %475 = vmatprep.subr.mxu0 0.0
    %476 = vmatpush1.msra.mxu0 0.0
    %477 = vmatprep.subr.mxu0 0.0
    %478 = vmatpush1.msra.mxu0 0.0
    %479 = vmatprep.subr.mxu0 0.0
    %480 = vmatpush1.msra.mxu0 0.0
    %481 = vmatprep.subr.mxu0 0.0
    %482 = vmatpush1.msra.mxu0 0.0
    %483 = vmatprep.subr.mxu0 0.0
    %484 = vmatpush1.msra.mxu0 0.0
    %485 = vmatprep.subr.mxu0 0.0
    %486 = vmatpush1.msra.mxu0 0.0
    %487 = vmatprep.subr.mxu0 0.0
    %488 = vmatpush1.msra.mxu0 0.0
    %489 = vmatprep.subr.mxu0 0.0
    %490 = vmatpush1.msra.mxu0 0.0
    %491 = vmatprep.subr.mxu0 0.0
    %492 = vmatpush1.msra.mxu0 0.0
    %493 = vmatprep.subr.mxu0 0.0
    %494 = vmatpush1.msra.mxu0 %v449
    %495 = vmatprep.subr.mxu0 0.0
    %496 = vmatpush2.msra.mxu0 0.0
    %497 = vmatprep.subr.mxu0 0.0
    %498 = vmatpush2.msra.mxu0 0.0
    %499 = vmatprep.subr.mxu0 0.0
    %500 = vmatpush2.msra.mxu0 0.0
    %501 = vmatprep.subr.mxu0 0.0
    %502 = vmatpush2.msra.mxu0 0.0
    %503 = vmatprep.subr.mxu0 0.0
    %504 = vmatpush2.msra.mxu0 0.0
    %505 = vmatprep.subr.mxu0 0.0
    %506 = vmatpush2.msra.mxu0 0.0
    %507 = vmatprep.subr.mxu0 0.0
    %508 = vmatpush2.msra.mxu0 0.0
    %509 = vmatprep.subr.mxu0 0.0
    %510 = vmatpush2.msra.mxu0 0.0
    %511 = vmatprep.subr.mxu0 0.0
    %512 = vmatpush2.msra.mxu0 0.0
    %513 = vmatprep.subr.mxu0 0.0
    %514 = vmatpush2.msra.mxu0 0.0
    %515 = vmatprep.subr.mxu0 0.0
    %516 = vmatpush2.msra.mxu0 0.0
    %517 = vmatprep.subr.mxu0 0.0
    %518 = vmatpush2.msra.mxu0 0.0
    %519 = vmatprep.subr.mxu0 0.0
    %520 = vmatpush2.msra.mxu0 0.0
    %521 = vmatprep.subr.mxu0 0.0
    %522 = vmatpush2.msra.mxu0 0.0
    %523 = vmatprep.subr.mxu0 0.0
    %524 = vmatpush2.msra.mxu0 0.0
    %525 = vmatprep.subr.mxu0 0.0
    %526 = vmatpush2.msra.mxu0 0.0
    %527 = vmatprep.mubr.f32.mxu0 0.0
    %528 = vmatmul.mubr.f32.gmra.mxu0 %v452
    %v529 = vpop.f32.mrf.mxu0
    %v530 = vadd.f32 0.0, %v529
    %v531 = vpop.f32.mrf.mxu0
    %532 = vmatprep.mubr.f32.mxu0 0.0
    %533 = vmatmul.mubr.f32.gmra.mxu0 %v455
    %v534 = vpop.f32.mrf.mxu0
    %v535 = vadd.f32 0.0, %v534
    %v536 = vpop.f32.mrf.mxu0
    %537 = vmatprep.mubr.f32.mxu0 0.0
    %538 = vmatmul.mubr.f32.gmra.mxu0 %v458
    %v539 = vpop.f32.mrf.mxu0
    %v540 = vadd.f32 0.0, %v539
    %v541 = vpop.f32.mrf.mxu0
    %542 = vmatprep.mubr.f32.mxu0 0.0
    %543 = vmatmul.mubr.f32.gmra.mxu0 %v461
    %v544 = vpop.f32.mrf.mxu0
    %v545 = vadd.f32 0.0, %v544
    %v546 = vpop.f32.mrf.mxu0
    %547 = vdwg.mxu0
    %v548 = vadd.f32 %v431, %v530
    %v549 = vadd.f32 %v436, %v535
    %v550 = vadd.f32 %v441, %v540
    %v551 = vadd.f32 %v446, %v545
    %v552 = vld [vmem:[%s6] sm:$0x1]
    %v554 = vlaneseq
    %v555 = vshrl.u32 %v554, 7
    %v556 = vsub.s32 0, %v555
    %v557 = vrot.slane %v552, %v556
    %v559 = vadd.f32 %v548, %v557
    %v560 = vadd.f32 %v549, %v557
    %v561 = vadd.f32 %v550, %v557
    %v562 = vadd.f32 %v551, %v557
    %vm563 = vcmp.gt.f32.partialorder %v559, 0.0
    %vm564 = vcmp.gt.f32.partialorder %v560, 0.0
    %vm565 = vcmp.gt.f32.partialorder %v561, 0.0
    %vm566 = vcmp.gt.f32.partialorder %v562, 0.0
    %v567 = vmul.f32 %v559, 0.01
    %v568 = vmul.f32 %v560, 0.01
    %v569 = vmul.f32 %v561, 0.01
    %v570 = vmul.f32 %v562, 0.01
    %v571 = vsel %vm563, %v559, %v567
    %v572 = vsel %vm564, %v560, %v568
    %v573 = vsel %vm565, %v561, %v569
    %v574 = vsel %vm566, %v562, %v570
    %v575 = vld [vmem:[%s7] sm:$0xff]
    %v576 = vld [vmem:[%s7 + $0x8] sm:$0xff]
    %v577 = vld [vmem:[%s7 + $0x10] sm:$0xff]
    %v578 = vld [vmem:[%s7 + $0x18] sm:$0xff]
    %v579 = vld [vmem:[%s8] sm:$0x1]
    %v581 = vlaneseq
    %v582 = vshrl.u32 %v581, 7
    %v583 = vsub.s32 0, %v582
    %v584 = vrot.slane %v579, %v583
    %v587 = vsel %vm164, %v571, 0
    %v590 = vsel %vm164, %v572, 0
    %v593 = vsel %vm164, %v573, 0
    %v596 = vsel %vm164, %v574, 0
    %598 = vmatprep.subr.mxu0 0.0
    %599 = vmatpush1.msra.mxu0 0.0
    %600 = vmatprep.subr.mxu0 0.0
    %601 = vmatpush1.msra.mxu0 0.0
    %602 = vmatprep.subr.mxu0 0.0
    %603 = vmatpush1.msra.mxu0 0.0
    %604 = vmatprep.subr.mxu0 0.0
    %605 = vmatpush1.msra.mxu0 0.0
    %606 = vmatprep.subr.mxu0 0.0
    %607 = vmatpush1.msra.mxu0 0.0
    %608 = vmatprep.subr.mxu0 0.0
    %609 = vmatpush1.msra.mxu0 0.0
    %610 = vmatprep.subr.mxu0 0.0
    %611 = vmatpush1.msra.mxu0 0.0
    %612 = vmatprep.subr.mxu0 0.0
    %613 = vmatpush1.msra.mxu0 0.0
    %614 = vmatprep.subr.mxu0 0.0
    %615 = vmatpush1.msra.mxu0 0.0
    %616 = vmatprep.subr.mxu0 0.0
    %617 = vmatpush1.msra.mxu0 0.0
    %618 = vmatprep.subr.mxu0 0.0
    %619 = vmatpush1.msra.mxu0 0.0
    %620 = vmatprep.subr.mxu0 0.0
    %621 = vmatpush1.msra.mxu0 0.0
    %622 = vmatprep.subr.mxu0 0.0
    %623 = vmatpush1.msra.mxu0 %v578
    %624 = vmatprep.subr.mxu0 0.0
    %625 = vmatpush1.msra.mxu0 %v577
    %626 = vmatprep.subr.mxu0 0.0
    %627 = vmatpush1.msra.mxu0 %v576
    %628 = vmatprep.subr.mxu0 0.0
    %629 = vmatpush1.msra.mxu0 %v575
    %630 = vmatprep.subr.mxu0 0.0
    %631 = vmatpush2.msra.mxu0 0.0
    %632 = vmatprep.subr.mxu0 0.0
    %633 = vmatpush2.msra.mxu0 0.0
    %634 = vmatprep.subr.mxu0 0.0
    %635 = vmatpush2.msra.mxu0 0.0
    %636 = vmatprep.subr.mxu0 0.0
    %637 = vmatpush2.msra.mxu0 0.0
    %638 = vmatprep.subr.mxu0 0.0
    %639 = vmatpush2.msra.mxu0 0.0
    %640 = vmatprep.subr.mxu0 0.0
    %641 = vmatpush2.msra.mxu0 0.0
    %642 = vmatprep.subr.mxu0 0.0
    %643 = vmatpush2.msra.mxu0 0.0
    %644 = vmatprep.subr.mxu0 0.0
    %645 = vmatpush2.msra.mxu0 0.0
    %646 = vmatprep.subr.mxu0 0.0
    %647 = vmatpush2.msra.mxu0 0.0
    %648 = vmatprep.subr.mxu0 0.0
    %649 = vmatpush2.msra.mxu0 0.0
    %650 = vmatprep.subr.mxu0 0.0
    %651 = vmatpush2.msra.mxu0 0.0
    %652 = vmatprep.subr.mxu0 0.0
    %653 = vmatpush2.msra.mxu0 0.0
    %654 = vmatprep.subr.mxu0 0.0
    %655 = vmatpush2.msra.mxu0 0.0
    %656 = vmatprep.subr.mxu0 0.0
    %657 = vmatpush2.msra.mxu0 0.0
    %658 = vmatprep.subr.mxu0 0.0
    %659 = vmatpush2.msra.mxu0 0.0
    %660 = vmatprep.subr.mxu0 0.0
    %661 = vmatpush2.msra.mxu0 0.0
    %662 = vmatprep.mubr.f32.mxu0 0.0
    %663 = vmatmul.mubr.f32.gmra.mxu0 %v587
    %v664 = vpop.f32.mrf.mxu0
    %v665 = vadd.f32 %v584, %v664
    %v666 = vpop.f32.mrf.mxu0
    %667 = vmatprep.mubr.f32.mxu0 0.0
    %668 = vmatmul.mubr.f32.gmra.mxu0 %v590
    %v669 = vpop.f32.mrf.mxu0
    %v670 = vadd.f32 %v584, %v669
    %v671 = vpop.f32.mrf.mxu0
    %672 = vmatprep.mubr.f32.mxu0 0.0
    %673 = vmatmul.mubr.f32.gmra.mxu0 %v593
    %v674 = vpop.f32.mrf.mxu0
    %v675 = vadd.f32 %v584, %v674
    %v676 = vpop.f32.mrf.mxu0
    %677 = vmatprep.mubr.f32.mxu0 0.0
    %678 = vmatmul.mubr.f32.gmra.mxu0 %v596
    %v679 = vpop.f32.mrf.mxu0
    %v680 = vadd.f32 %v584, %v679
    %v681 = vpop.f32.mrf.mxu0
    %682 = vdwg.mxu0
    %v684 = vsel %vm164, %v158, 0
    %v687 = vsel %vm164, %v159, 0
    %689 = vmatprep.subr.mxu0 0.0
    %690 = vmatpush1.msra.mxu0 0.0
    %691 = vmatprep.subr.mxu0 0.0
    %692 = vmatpush1.msra.mxu0 0.0
    %693 = vmatprep.subr.mxu0 0.0
    %694 = vmatpush1.msra.mxu0 0.0
    %695 = vmatprep.subr.mxu0 0.0
    %696 = vmatpush1.msra.mxu0 0.0
    %697 = vmatprep.subr.mxu0 0.0
    %698 = vmatpush1.msra.mxu0 0.0
    %699 = vmatprep.subr.mxu0 0.0
    %700 = vmatpush1.msra.mxu0 0.0
    %701 = vmatprep.subr.mxu0 0.0
    %702 = vmatpush1.msra.mxu0 0.0
    %703 = vmatprep.subr.mxu0 0.0
    %704 = vmatpush1.msra.mxu0 0.0
    %705 = vmatprep.subr.mxu0 0.0
    %706 = vmatpush1.msra.mxu0 0.0
    %707 = vmatprep.subr.mxu0 0.0
    %708 = vmatpush1.msra.mxu0 0.0
    %709 = vmatprep.subr.mxu0 0.0
    %710 = vmatpush1.msra.mxu0 0.0
    %711 = vmatprep.subr.mxu0 0.0
    %712 = vmatpush1.msra.mxu0 0.0
    %713 = vmatprep.subr.mxu0 0.0
    %714 = vmatpush1.msra.mxu0 %v680
    %715 = vmatprep.subr.mxu0 0.0
    %716 = vmatpush1.msra.mxu0 %v675
    %717 = vmatprep.subr.mxu0 0.0
    %718 = vmatpush1.msra.mxu0 %v670
    %719 = vmatprep.subr.mxu0 0.0
    %720 = vmatpush1.msra.mxu0 %v665
    %721 = vmatprep.subr.mxu0 0.0
    %722 = vmatpush2.msra.mxu0 0.0
    %723 = vmatprep.subr.mxu0 0.0
    %724 = vmatpush2.msra.mxu0 0.0
    %725 = vmatprep.subr.mxu0 0.0
    %726 = vmatpush2.msra.mxu0 0.0
    %727 = vmatprep.subr.mxu0 0.0
    %728 = vmatpush2.msra.mxu0 0.0
    %729 = vmatprep.subr.mxu0 0.0
    %730 = vmatpush2.msra.mxu0 0.0
    %731 = vmatprep.subr.mxu0 0.0
    %732 = vmatpush2.msra.mxu0 0.0
    %733 = vmatprep.subr.mxu0 0.0
    %734 = vmatpush2.msra.mxu0 0.0
    %735 = vmatprep.subr.mxu0 0.0
    %736 = vmatpush2.msra.mxu0 0.0
    %737 = vmatprep.subr.mxu0 0.0
    %738 = vmatpush2.msra.mxu0 0.0
    %739 = vmatprep.subr.mxu0 0.0
    %740 = vmatpush2.msra.mxu0 0.0
    %741 = vmatprep.subr.mxu0 0.0
    %742 = vmatpush2.msra.mxu0 0.0
    %743 = vmatprep.subr.mxu0 0.0
    %744 = vmatpush2.msra.mxu0 0.0
    %745 = vmatprep.subr.mxu0 0.0
    %746 = vmatpush2.msra.mxu0 0.0
    %747 = vmatprep.subr.mxu0 0.0
    %748 = vmatpush2.msra.mxu0 0.0
    %749 = vmatprep.subr.mxu0 0.0
    %750 = vmatpush2.msra.mxu0 0.0
    %751 = vmatprep.subr.mxu0 0.0
    %752 = vmatpush2.msra.mxu0 0.0
    %753 = vmatprep.mubr.f32.mxu0 0.0
    %754 = vmatmul.mubr.f32.gmra.mxu0 %v684
    %v755 = vpop.f32.mrf.mxu0
    %v756 = vadd.f32 0.0, %v755
    %v757 = vpop.f32.mrf.mxu0
    %758 = vmatprep.mubr.f32.mxu0 0.0
    %759 = vmatmul.mubr.f32.gmra.mxu0 %v687
    %v760 = vpop.f32.mrf.mxu0
    %v761 = vadd.f32 0.0, %v760
    %v762 = vpop.f32.mrf.mxu0
    %763 = vdwg.mxu0
    %v764 = vld [vmem:[#allocation5] sm:$0xff]
    %v765 = vld [vmem:[#allocation5 + $0x8] sm:$0xff]
    %v766 = vld [vmem:[#allocation5 + $0x10] sm:$0xff]
    %v767 = vld [vmem:[#allocation5 + $0x18] sm:$0xff]
    %v769 = vsel %vm164, %v756, 0
    %v772 = vsel %vm164, %v761, 0
    %774 = vmatprep.subr.mxu0 0.0
    %775 = vmatpush1.msra.mxu0 0.0
    %776 = vmatprep.subr.mxu0 0.0
    %777 = vmatpush1.msra.mxu0 0.0
    %778 = vmatprep.subr.mxu0 0.0
    %779 = vmatpush1.msra.mxu0 0.0
    %780 = vmatprep.subr.mxu0 0.0
    %781 = vmatpush1.msra.mxu0 0.0
    %782 = vmatprep.subr.mxu0 0.0
    %783 = vmatpush1.msra.mxu0 0.0
    %784 = vmatprep.subr.mxu0 0.0
    %785 = vmatpush1.msra.mxu0 0.0
    %786 = vmatprep.subr.mxu0 0.0
    %787 = vmatpush1.msra.mxu0 0.0
    %788 = vmatprep.subr.mxu0 0.0
    %789 = vmatpush1.msra.mxu0 0.0
    %790 = vmatprep.subr.mxu0 0.0
    %791 = vmatpush1.msra.mxu0 0.0
    %792 = vmatprep.subr.mxu0 0.0
    %793 = vmatpush1.msra.mxu0 0.0
    %794 = vmatprep.subr.mxu0 0.0
    %795 = vmatpush1.msra.mxu0 0.0
    %796 = vmatprep.subr.mxu0 0.0
    %797 = vmatpush1.msra.mxu0 0.0
    %798 = vmatprep.subr.mxu0 0.0
    %799 = vmatpush1.msra.mxu0 %v767
    %800 = vmatprep.subr.mxu0 0.0
    %801 = vmatpush1.msra.mxu0 %v766
    %802 = vmatprep.subr.mxu0 0.0
    %803 = vmatpush1.msra.mxu0 %v765
    %804 = vmatprep.subr.mxu0 0.0
    %805 = vmatpush1.msra.mxu0 %v764
    %806 = vmatprep.subr.mxu0 0.0
    %807 = vmatpush2.msra.mxu0 0.0
    %808 = vmatprep.subr.mxu0 0.0
    %809 = vmatpush2.msra.mxu0 0.0
    %810 = vmatprep.subr.mxu0 0.0
    %811 = vmatpush2.msra.mxu0 0.0
    %812 = vmatprep.subr.mxu0 0.0
    %813 = vmatpush2.msra.mxu0 0.0
    %814 = vmatprep.subr.mxu0 0.0
    %815 = vmatpush2.msra.mxu0 0.0
    %816 = vmatprep.subr.mxu0 0.0
    %817 = vmatpush2.msra.mxu0 0.0
    %818 = vmatprep.subr.mxu0 0.0
    %819 = vmatpush2.msra.mxu0 0.0
    %820 = vmatprep.subr.mxu0 0.0
    %821 = vmatpush2.msra.mxu0 0.0
    %822 = vmatprep.subr.mxu0 0.0
    %823 = vmatpush2.msra.mxu0 0.0
    %824 = vmatprep.subr.mxu0 0.0
    %825 = vmatpush2.msra.mxu0 0.0
    %826 = vmatprep.subr.mxu0 0.0
    %827 = vmatpush2.msra.mxu0 0.0
    %828 = vmatprep.subr.mxu0 0.0
    %829 = vmatpush2.msra.mxu0 0.0
    %830 = vmatprep.subr.mxu0 0.0
    %831 = vmatpush2.msra.mxu0 0.0
    %832 = vmatprep.subr.mxu0 0.0
    %833 = vmatpush2.msra.mxu0 0.0
    %834 = vmatprep.subr.mxu0 0.0
    %835 = vmatpush2.msra.mxu0 0.0
    %836 = vmatprep.subr.mxu0 0.0
    %837 = vmatpush2.msra.mxu0 0.0
    %838 = vmatprep.mubr.f32.mxu0 0.0
    %839 = vmatmul.mubr.f32.gmra.mxu0 %v769
    %v840 = vpop.f32.mrf.mxu0
    %v841 = vadd.f32 0.0, %v840
    %v842 = vpop.f32.mrf.mxu0
    %843 = vmatprep.mubr.f32.mxu0 0.0
    %844 = vmatmul.mubr.f32.gmra.mxu0 %v772
    %v845 = vpop.f32.mrf.mxu0
    %v846 = vadd.f32 0.0, %v845
    %v847 = vpop.f32.mrf.mxu0
    %848 = vdwg.mxu0
    %851 = vrot.lane.b32.xlu0 %v841, 64
    %v852 = vpop.permute.xlu0 %851
    %853 = vrot.lane.b32.xlu0 %v846, 64
    %v854 = vpop.permute.xlu0 %853
    %v857 = vadd.f32 %v238, %v852
    %v858 = vadd.f32 %v243, %v854
    %v859 = vld [vmem:[%s10] sm:$0x1]
    %v861 = vlaneseq
    %v862 = vshrl.u32 %v861, 7
    %v863 = vsub.s32 0, %v862
    %v864 = vrot.slane %v859, %v863
    %865 = vrot.lane.b32.xlu0 %v864, 64
    %v866 = vpop.permute.xlu0 %865
    %v868 = vadd.f32 %v857, %v866
    %v869 = vadd.f32 %v858, %v866
    %vm870 = vcmp.gt.f32.partialorder %v868, 0.0
    %vm871 = vcmp.gt.f32.partialorder %v869, 0.0
    %v872 = vmul.f32 %v868, 0.01
    %v873 = vmul.f32 %v869, 0.01
    %v874 = vsel %vm870, %v868, %v872
    %v875 = vsel %vm871, %v869, %v873
    %v876 = vld [vmem:[#allocation7] sm:$0xff]
    %v877 = vld [vmem:[#allocation7 + $0x8] sm:$0xff]
    %v878 = vld [vmem:[#allocation7 + $0x10] sm:$0xff]
    %v879 = vld [vmem:[#allocation7 + $0x18] sm:$0xff]
    %v880 = vld [vmem:[%s12] sm:$0x1]
    %v882 = vlaneseq
    %v883 = vshrl.u32 %v882, 7
    %v884 = vsub.s32 0, %v883
    %v885 = vrot.slane %v880, %v884
    %889 = vrot.lane.b32.xlu0 %v874, 64
    %v890 = vpop.permute.xlu0 %889
    %891 = vrot.lane.b32.xlu0 %v875, 64
    %v892 = vpop.permute.xlu0 %891
    %v893 = vsel %vm164, %v890, 0
    %v895 = vsel %vm164, %v892, 0
    %897 = vmatprep.subr.mxu0 0.0
    %898 = vmatpush1.msra.mxu0 0.0
    %899 = vmatprep.subr.mxu0 0.0
    %900 = vmatpush1.msra.mxu0 0.0
    %901 = vmatprep.subr.mxu0 0.0
    %902 = vmatpush1.msra.mxu0 0.0
    %903 = vmatprep.subr.mxu0 0.0
    %904 = vmatpush1.msra.mxu0 0.0
    %905 = vmatprep.subr.mxu0 0.0
    %906 = vmatpush1.msra.mxu0 0.0
    %907 = vmatprep.subr.mxu0 0.0
    %908 = vmatpush1.msra.mxu0 0.0
    %909 = vmatprep.subr.mxu0 0.0
    %910 = vmatpush1.msra.mxu0 0.0
    %911 = vmatprep.subr.mxu0 0.0
    %912 = vmatpush1.msra.mxu0 0.0
    %913 = vmatprep.subr.mxu0 0.0
    %914 = vmatpush1.msra.mxu0 0.0
    %915 = vmatprep.subr.mxu0 0.0
    %916 = vmatpush1.msra.mxu0 0.0
    %917 = vmatprep.subr.mxu0 0.0
    %918 = vmatpush1.msra.mxu0 0.0
    %919 = vmatprep.subr.mxu0 0.0
    %920 = vmatpush1.msra.mxu0 0.0
    %921 = vmatprep.subr.mxu0 0.0
    %922 = vmatpush1.msra.mxu0 %v879
    %923 = vmatprep.subr.mxu0 0.0
    %924 = vmatpush1.msra.mxu0 %v878
    %925 = vmatprep.subr.mxu0 0.0
    %926 = vmatpush1.msra.mxu0 %v877
    %927 = vmatprep.subr.mxu0 0.0
    %928 = vmatpush1.msra.mxu0 %v876
    %929 = vmatprep.subr.mxu0 0.0
    %930 = vmatpush2.msra.mxu0 0.0
    %931 = vmatprep.subr.mxu0 0.0
    %932 = vmatpush2.msra.mxu0 0.0
    %933 = vmatprep.subr.mxu0 0.0
    %934 = vmatpush2.msra.mxu0 0.0
    %935 = vmatprep.subr.mxu0 0.0
    %936 = vmatpush2.msra.mxu0 0.0
    %937 = vmatprep.subr.mxu0 0.0
    %938 = vmatpush2.msra.mxu0 0.0
    %939 = vmatprep.subr.mxu0 0.0
    %940 = vmatpush2.msra.mxu0 0.0
    %941 = vmatprep.subr.mxu0 0.0
    %942 = vmatpush2.msra.mxu0 0.0
    %943 = vmatprep.subr.mxu0 0.0
    %944 = vmatpush2.msra.mxu0 0.0
    %945 = vmatprep.subr.mxu0 0.0
    %946 = vmatpush2.msra.mxu0 0.0
    %947 = vmatprep.subr.mxu0 0.0
    %948 = vmatpush2.msra.mxu0 0.0
    %949 = vmatprep.subr.mxu0 0.0
    %950 = vmatpush2.msra.mxu0 0.0
    %951 = vmatprep.subr.mxu0 0.0
    %952 = vmatpush2.msra.mxu0 0.0
    %953 = vmatprep.subr.mxu0 0.0
    %954 = vmatpush2.msra.mxu0 0.0
    %955 = vmatprep.subr.mxu0 0.0
    %956 = vmatpush2.msra.mxu0 0.0
    %957 = vmatprep.subr.mxu0 0.0
    %958 = vmatpush2.msra.mxu0 0.0
    %959 = vmatprep.subr.mxu0 0.0
    %960 = vmatpush2.msra.mxu0 0.0
    %961 = vmatprep.mubr.f32.mxu0 0.0
    %962 = vmatmul.mubr.f32.gmra.mxu0 %v893
    %v963 = vpop.f32.mrf.mxu0
    %v964 = vadd.f32 %v885, %v963
    %v965 = vpop.f32.mrf.mxu0
    %966 = vmatprep.mubr.f32.mxu0 0.0
    %967 = vmatmul.mubr.f32.gmra.mxu0 %v895
    %v968 = vpop.f32.mrf.mxu0
    %v969 = vadd.f32 %v885, %v968
    %v970 = vpop.f32.mrf.mxu0
    %971 = vdwg.mxu0
    %vm972 = vcmp.gt.f32.partialorder %v964, 0.0
    %vm973 = vcmp.gt.f32.partialorder %v969, 0.0
    %v974 = vmul.f32 %v964, 0.01
    %v975 = vmul.f32 %v969, 0.01
    %v976 = vsel %vm972, %v964, %v974
    %v977 = vsel %vm973, %v969, %v975
    %978 = vst.msk [vmem:[#allocation8] sm:$0xff] %vm164, %v976
    %979 = vst.msk [vmem:[#allocation8 + $0x8] sm:$0xff] %vm164, %v977
    // Predicated region
    $region66: #{tpu_custom_call.1} parent=1 // pred_check
      _
    $region67: #{tpu_custom_call.1} parent=1 // pred_check_branch
      %981 = sbr.rel (0) target = $region69
    $region68: #{tpu_custom_call.1} parent=1 // pred_region
      %s983 = ssub.s32 256, 256
      %984 = vsyncadd [#allocation4], %s983
      %s985 = sshll.u32 [#allocation8], 4
      %s986 = int_to_ptr.vmem [resolvable:$true] %s985
      %991 = dma.vmem_to_hbm [thread:$0]  %s986, 256, %s13, [#allocation4], 128, 128, 8
    $region69: #{tpu_custom_call.1} parent=1 // pred_fallthru
      _
    // Predicated region
    $region70: #{tpu_custom_call.1} parent=1 // pred_check
      _
    $region71: #{tpu_custom_call.1} parent=1 // pred_check_branch
      %993 = sbr.rel (0) target = $region73
    $region72: #{tpu_custom_call.1} parent=1 // pred_region
      %994 = dma.done [#allocation4], 256
    $region73: #{tpu_custom_call.1} parent=1 // pred_fallthru
      _
    %995 = vsyncpa [#allocation3], 1
    %996 = vsyncpa [#allocation6], 1
    %997 = vsyncpa [#allocation4], 1

</llo_original>
